<compile_context>
chip_gen: v7x
topology: tpu7x:2x2x1
jax: 0.10.0
libtpu: 0.0.40
codegen_flags: <defaults>
</compile_context>

<pallas_src>
import functools

import jax
import jax.numpy as jnp
from jax.experimental import pallas as pl
from jax.experimental.pallas import tpu as pltpu

STATE_DIM = 2      # MountainCar-v0 observation_space.shape[0]
ACTION_DIM = 3     # MountainCar-v0 action_space.n
HIDDEN = 128
PAD_ACT = 128      # lane-padded action dim for the in-kernel fc3 matmul
MIN_TB = 256       # minimum batch tile (MXU-row aligned, multiple of 8/128)
MAX_TB = 2048      # cap keeps per-tile VMEM ~3-4 MiB (safe on v7x's 64 MiB)


def _policy_kernel(x_ref, w1_ref, b1_ref, w2_ref, b2_ref, w3_ref, b3_ref, o_ref):
    x = x_ref[...]                                          # (TB, STATE_DIM) f32

    # fc1: K = STATE_DIM is degenerate for the MXU -> broadcast FMAs on the VPU.
    h1 = x[:, 0:1] * w1_ref[0:1, :]
    for k in range(1, STATE_DIM):
        h1 = h1 + x[:, k:k + 1] * w1_ref[k:k + 1, :]
    h1 = jnp.maximum(h1 + b1_ref[...], 0.0)                 # (TB, HIDDEN) f32

    # fc2 + ReLU: bf16 MXU inputs, f32 accumulate.
    h2 = jnp.dot(h1.astype(jnp.bfloat16), w2_ref[...],
                 preferred_element_type=jnp.float32)
    h2 = jnp.maximum(h2 + b2_ref[...], 0.0)                 # (TB, HIDDEN) f32

    # fc3 + softmax over lane-dense padded logits (pad bias -1e30 -> exp == 0).
    logits = jnp.dot(h2.astype(jnp.bfloat16), w3_ref[...],
                     preferred_element_type=jnp.float32) + b3_ref[...]
    m = jnp.max(logits, axis=-1, keepdims=True)
    e = jnp.exp(logits - m)                                  # (TB, PAD_ACT)
    denom = jnp.sum(e, axis=-1, keepdims=True)               # (TB, 1)
    inv = 1.0 / denom                                        # exact; (TB, 1) only
    # Only the real action columns leave the kernel (narrow masked store).
    o_ref[...] = e[:, :ACTION_DIM] * inv


def prepare_params(params):
    """One-time packing.

    * biases -> (1, H) rows
    * fc3 weight padded to a lane-dense (HIDDEN, 128) slab, pad bias -1e30
    * w2 / padded w3 stored bf16 so the MXU gets bf16 operands directly
    """
    w1, b1, w2, b2, w3, b3 = params
    w3_p = jnp.zeros((HIDDEN, PAD_ACT), jnp.float32).at[:, :ACTION_DIM].set(w3)
    b3_p = jnp.full((1, PAD_ACT), -1e30, jnp.float32).at[:, :ACTION_DIM].set(b3)
    return (
        w1.astype(jnp.float32),                 # fc1 stays f32 (VPU path)
        b1.reshape(1, HIDDEN).astype(jnp.float32),
        w2.astype(jnp.bfloat16),                # MXU operand
        b2.reshape(1, HIDDEN).astype(jnp.float32),
        w3_p.astype(jnp.bfloat16),              # MXU operand (padded)
        b3_p,                                   # f32 (holds -1e30 pad bias)
    )


def _round_up(v, m):
    return ((v + m - 1) // m) * m


def _pick_tb(batch):
    """Adaptive batch tile: big enough to amortize grid-step overhead, split
    into >= 2 tiles when the batch allows it (v7x megacore)."""
    return min(MAX_TB, max(MIN_TB, _round_up(pl.cdiv(batch, 2), MIN_TB)))


@functools.partial(jax.jit, static_argnames=("tb",))
def _policy_forward_tb(x, prepared_params, *, tb):
    w1, b1, w2, b2, w3_p, b3_p = prepared_params
    B = x.shape[0]
    n_tiles = pl.cdiv(B, tb)
    b_pad = n_tiles * tb
    if b_pad != B:
        x = jnp.pad(x, ((0, b_pad - B), (0, 0)))

    # Weights/biases: constant block index -> fetched once, VMEM-resident.
    def resident(shape):
        return pl.BlockSpec(shape, lambda i: (0, 0))

    out = pl.pallas_call(
        _policy_kernel,
        out_shape=jax.ShapeDtypeStruct((b_pad, ACTION_DIM), jnp.float32),
        grid=(n_tiles,),
        in_specs=[
            pl.BlockSpec((tb, STATE_DIM), lambda i: (i, 0)),   # x: tiled over batch
            resident((STATE_DIM, HIDDEN)),                     # w1
            resident((1, HIDDEN)),                             # b1
            resident((HIDDEN, HIDDEN)),                        # w2 (bf16)
            resident((1, HIDDEN)),                             # b2
            resident((HIDDEN, PAD_ACT)),                       # w3 (bf16, padded)
            resident((1, PAD_ACT)),                            # b3 (padded)
        ],
        # Narrow (tb, ACTION_DIM) output: legal since the last dim equals the
        # full array dim; kills the padded-slab writeback + wrapper slice copy.
        out_specs=pl.BlockSpec((tb, ACTION_DIM), lambda i: (i, 0)),
        compiler_params=pltpu.CompilerParams(
            dimension_semantics=("parallel",),                 # megacore split on v7x
        ),
    )(x, w1, b1, w2, b2, w3_p, b3_p)

    return out[:B]


def policy_forward(x, prepared_params):
    """x: (B, STATE_DIM) float32 -> (B, ACTION_DIM) softmax probabilities."""
    return _policy_forward_tb(x, prepared_params, tb=_pick_tb(x.shape[0]))


def init_params(key):
    """Deterministic init mimicking PyTorch Linear default U(-1/sqrt(fan_in), +)."""
    ks = jax.random.split(key, 6)

    def lin(kw, kb, fan_in, fan_out):
        bound = 1.0 / jnp.sqrt(jnp.float32(fan_in))
        w = jax.random.uniform(kw, (fan_in, fan_out), jnp.float32, -bound, bound)
        b = jax.random.uniform(kb, (fan_out,), jnp.float32, -bound, bound)
        return w, b

    w1, b1 = lin(ks[0], ks[1], STATE_DIM, HIDDEN)
    w2, b2 = lin(ks[2], ks[3], HIDDEN, HIDDEN)
    w3, b3 = lin(ks[4], ks[5], HIDDEN, ACTION_DIM)
    return (w1, b1, w2, b2, w3, b3)


def reference_forward(x, params):
    w1, b1, w2, b2, w3, b3 = params
    h1 = jax.nn.relu(x @ w1 + b1)
    h2 = jax.nn.relu(h1 @ w2 + b2)
    return jax.nn.softmax(h2 @ w3 + b3, axis=-1)


if __name__ == "__main__":
    key = jax.random.PRNGKey(0)
    kx, kp = jax.random.split(key)

    B = 8
    x = jax.random.normal(kx, (B, STATE_DIM), jnp.float32)
    params = init_params(kp)
    prepared = prepare_params(params)   # one-time padding / packing / bf16 cast

    probs = policy_forward(x, prepared)
    probs = jax.block_until_ready(probs)

    ref = reference_forward(x, params)
    assert probs.shape == (B, ACTION_DIM)
    # Exact divide -> rows sum to 1 up to f32 rounding.
    assert jnp.allclose(jnp.sum(probs, axis=-1), 1.0, atol=1e-5)
    # Looser vs the f32 reference only because fc2/fc3 use bf16 MXU operands.
    assert jnp.allclose(probs, ref, atol=2e-2, rtol=2e-2)

    print("KERNEL_OK")
</pallas_src>

<mosaic_0001>
module attributes {stable_mosaic.version = 11 : i64} {
  func.func @_policy_kernel(%arg0: i32, %arg1: memref<256x2xf32, #tpu.memory_space<vmem>>, %arg2: memref<2x128xf32, #tpu.memory_space<vmem>>, %arg3: memref<1x128xf32, #tpu.memory_space<vmem>>, %arg4: memref<128x128xbf16, #tpu.memory_space<vmem>>, %arg5: memref<1x128xf32, #tpu.memory_space<vmem>>, %arg6: memref<128x128xbf16, #tpu.memory_space<vmem>>, %arg7: memref<1x128xf32, #tpu.memory_space<vmem>>, %arg8: memref<256x3xf32, #tpu.memory_space<vmem>>) attributes {dimension_semantics = [#tpu.dimension_semantics<parallel>], iteration_bounds = array<i64: 1>, scalar_prefetch = 0 : i64, scratch_operands = 0 : i64, tpu.core_type = #tpu.core_type<tc>, window_params = [{transform_indices = @transform_0, window_bounds = array<i64: 256, 2>}, {pipeline_mode = #tpu.pipeline_mode<synchronous>, transform_indices = @transform_1, window_bounds = array<i64: 2, 128>}, {pipeline_mode = #tpu.pipeline_mode<synchronous>, transform_indices = @transform_2, window_bounds = array<i64: 1, 128>}, {pipeline_mode = #tpu.pipeline_mode<synchronous>, transform_indices = @transform_3, window_bounds = array<i64: 128, 128>}, {pipeline_mode = #tpu.pipeline_mode<synchronous>, transform_indices = @transform_4, window_bounds = array<i64: 1, 128>}, {pipeline_mode = #tpu.pipeline_mode<synchronous>, transform_indices = @transform_5, window_bounds = array<i64: 128, 128>}, {pipeline_mode = #tpu.pipeline_mode<synchronous>, transform_indices = @transform_6, window_bounds = array<i64: 1, 128>}, {transform_indices = @transform_7, window_bounds = array<i64: 256, 3>}]} {
    %c0 = arith.constant 0 : index
    %c0_0 = arith.constant 0 : index
    %0 = vector.load %arg1[%c0, %c0_0] : memref<256x2xf32, #tpu.memory_space<vmem>>, vector<256x2xf32>
    %1 = vector.extract_strided_slice %0 {offsets = [0, 0], sizes = [256, 1], strides = [1, 1]} : vector<256x2xf32> to vector<256x1xf32>
    %c0_1 = arith.constant 0 : index
    %c0_2 = arith.constant 0 : index
    %2 = vector.load %arg2[%c0_1, %c0_2] : memref<2x128xf32, #tpu.memory_space<vmem>>, vector<1x128xf32>
    %3 = vector.broadcast %1 : vector<256x1xf32> to vector<256x128xf32>
    %4 = vector.broadcast %2 : vector<1x128xf32> to vector<256x128xf32>
    %5 = arith.mulf %3, %4 : vector<256x128xf32>
    %6 = vector.extract_strided_slice %0 {offsets = [0, 1], sizes = [256, 1], strides = [1, 1]} : vector<256x2xf32> to vector<256x1xf32>
    %c1 = arith.constant 1 : index
    %c0_3 = arith.constant 0 : index
    %7 = vector.load %arg2[%c1, %c0_3] : memref<2x128xf32, #tpu.memory_space<vmem>>, vector<1x128xf32>
    %8 = vector.broadcast %6 : vector<256x1xf32> to vector<256x128xf32>
    %9 = vector.broadcast %7 : vector<1x128xf32> to vector<256x128xf32>
    %10 = arith.mulf %8, %9 : vector<256x128xf32>
    %11 = arith.addf %5, %10 : vector<256x128xf32>
    %c0_4 = arith.constant 0 : index
    %c0_5 = arith.constant 0 : index
    %12 = vector.load %arg3[%c0_4, %c0_5] : memref<1x128xf32, #tpu.memory_space<vmem>>, vector<1x128xf32>
    %13 = vector.broadcast %12 : vector<1x128xf32> to vector<256x128xf32>
    %14 = arith.addf %11, %13 : vector<256x128xf32>
    %cst = arith.constant 0.000000e+00 : f32
    %15 = vector.broadcast %cst : f32 to vector<256x128xf32>
    %16 = arith.maximumf %14, %15 : vector<256x128xf32>
    %17 = arith.truncf %16 : vector<256x128xf32> to vector<256x128xbf16>
    %c0_6 = arith.constant 0 : index
    %c0_7 = arith.constant 0 : index
    %18 = vector.load %arg4[%c0_6, %c0_7] : memref<128x128xbf16, #tpu.memory_space<vmem>>, vector<128x128xbf16>
    %cst_8 = arith.constant dense<0.000000e+00> : vector<256x128xf32>
    %19 = tpu.matmul %17, %18, %cst_8 {dimension_numbers = #tpu.dot_dimension_numbers<[1], [0], [0], [1], [0, 0, 1, 1], [], []>} : vector<256x128xbf16>, vector<128x128xbf16>, vector<256x128xf32> -> vector<256x128xf32>
    %c0_9 = arith.constant 0 : index
    %c0_10 = arith.constant 0 : index
    %20 = vector.load %arg5[%c0_9, %c0_10] : memref<1x128xf32, #tpu.memory_space<vmem>>, vector<1x128xf32>
    %21 = vector.broadcast %20 : vector<1x128xf32> to vector<256x128xf32>
    %22 = arith.addf %19, %21 : vector<256x128xf32>
    %cst_11 = arith.constant 0.000000e+00 : f32
    %23 = vector.broadcast %cst_11 : f32 to vector<256x128xf32>
    %24 = arith.maximumf %22, %23 : vector<256x128xf32>
    %25 = arith.truncf %24 : vector<256x128xf32> to vector<256x128xbf16>
    %c0_12 = arith.constant 0 : index
    %c0_13 = arith.constant 0 : index
    %26 = vector.load %arg6[%c0_12, %c0_13] : memref<128x128xbf16, #tpu.memory_space<vmem>>, vector<128x128xbf16>
    %cst_14 = arith.constant dense<0.000000e+00> : vector<256x128xf32>
    %27 = tpu.matmul %25, %26, %cst_14 {dimension_numbers = #tpu.dot_dimension_numbers<[1], [0], [0], [1], [0, 0, 1, 1], [], []>} : vector<256x128xbf16>, vector<128x128xbf16>, vector<256x128xf32> -> vector<256x128xf32>
    %c0_15 = arith.constant 0 : index
    %c0_16 = arith.constant 0 : index
    %28 = vector.load %arg7[%c0_15, %c0_16] : memref<1x128xf32, #tpu.memory_space<vmem>>, vector<1x128xf32>
    %29 = vector.broadcast %28 : vector<1x128xf32> to vector<256x128xf32>
    %30 = arith.addf %27, %29 : vector<256x128xf32>
    %cst_17 = arith.constant dense<0xFF800000> : vector<256xf32>
    %31 = vector.multi_reduction <maximumf>, %30, %cst_17 [1] : vector<256x128xf32> to vector<256xf32>
    %32 = vector.shape_cast %31 : vector<256xf32> to vector<256x1xf32>
    %33 = vector.broadcast %32 : vector<256x1xf32> to vector<256x128xf32>
    %34 = arith.subf %30, %33 : vector<256x128xf32>
    %35 = math.exp %34 : vector<256x128xf32>
    %cst_18 = arith.constant dense<0.000000e+00> : vector<256xf32>
    %36 = vector.multi_reduction <add>, %35, %cst_18 [1] : vector<256x128xf32> to vector<256xf32>
    %37 = vector.shape_cast %36 : vector<256xf32> to vector<256x1xf32>
    %cst_19 = arith.constant 1.000000e+00 : f32
    %38 = vector.broadcast %cst_19 : f32 to vector<256x1xf32>
    %39 = arith.divf %38, %37 : vector<256x1xf32>
    %40 = vector.extract_strided_slice %35 {offsets = [0, 0], sizes = [256, 3], strides = [1, 1]} : vector<256x128xf32> to vector<256x3xf32>
    %41 = vector.broadcast %39 : vector<256x1xf32> to vector<256x3xf32>
    %42 = arith.mulf %40, %41 : vector<256x3xf32>
    %c0_20 = arith.constant 0 : index
    %c0_21 = arith.constant 0 : index
    %43 = vector.load %arg8[%c0_20, %c0_21] : memref<256x3xf32, #tpu.memory_space<vmem>>, vector<256x3xf32>
    tpu.vector_store %arg8[%c0_20, %c0_21], %42 {strides = array<i32>} : memref<256x3xf32, #tpu.memory_space<vmem>>, vector<256x3xf32>,
    return
  }
  func.func @transform_0(%arg0: i32) -> (i32, i32) {
    %c0_i32 = arith.constant 0 : i32
    %c0_i32_0 = arith.constant 0 : i32
    return %arg0, %c0_i32 : i32, i32
  }
  func.func @transform_1(%arg0: i32) -> (i32, i32) {
    %c0_i32 = arith.constant 0 : i32
    %c0_i32_0 = arith.constant 0 : i32
    %c0_i32_1 = arith.constant 0 : i32
    return %c0_i32, %c0_i32_0 : i32, i32
  }
  func.func @transform_2(%arg0: i32) -> (i32, i32) {
    %c0_i32 = arith.constant 0 : i32
    %c0_i32_0 = arith.constant 0 : i32
    %c0_i32_1 = arith.constant 0 : i32
    return %c0_i32, %c0_i32_0 : i32, i32
  }
  func.func @transform_3(%arg0: i32) -> (i32, i32) {
    %c0_i32 = arith.constant 0 : i32
    %c0_i32_0 = arith.constant 0 : i32
    %c0_i32_1 = arith.constant 0 : i32
    return %c0_i32, %c0_i32_0 : i32, i32
  }
  func.func @transform_4(%arg0: i32) -> (i32, i32) {
    %c0_i32 = arith.constant 0 : i32
    %c0_i32_0 = arith.constant 0 : i32
    %c0_i32_1 = arith.constant 0 : i32
    return %c0_i32, %c0_i32_0 : i32, i32
  }
  func.func @transform_5(%arg0: i32) -> (i32, i32) {
    %c0_i32 = arith.constant 0 : i32
    %c0_i32_0 = arith.constant 0 : i32
    %c0_i32_1 = arith.constant 0 : i32
    return %c0_i32, %c0_i32_0 : i32, i32
  }
  func.func @transform_6(%arg0: i32) -> (i32, i32) {
    %c0_i32 = arith.constant 0 : i32
    %c0_i32_0 = arith.constant 0 : i32
    %c0_i32_1 = arith.constant 0 : i32
    return %c0_i32, %c0_i32_0 : i32, i32
  }
  func.func @transform_7(%arg0: i32) -> (i32, i32) {
    %c0_i32 = arith.constant 0 : i32
    %c0_i32_0 = arith.constant 0 : i32
    return %arg0, %c0_i32 : i32, i32
  }
}

</mosaic_0001>

<llo_original>
// kernel: _policy_forward_tb.1
$region0: #{_policy_forward_tb.1}
  #allocation0 [shape = 'u32[]', space=smem, size = 0x4, offset = 0x4, fixed_abs, tag = 'smem constant byte address 0x4 - core index']
  #allocation1 [shape = 'u32[144,128]{1,0:T(1,128)}', space=vmem, size = 0x12000, scoped, tag = 'internal scratch']
  %s0 = inlined_call_operand.vmem [shape: f32[256,2], index: 0, kind: input, shape index: {}]
  %s1 = inlined_call_operand.vmem [shape: f32[2,128], index: 1, kind: input, shape index: {}]
  %s2 = inlined_call_operand.vmem [shape: f32[1,128], index: 2, kind: input, shape index: {}]
  %s3 = inlined_call_operand.vmem [shape: bf16[128,128], index: 3, kind: input, shape index: {}]
  %s4 = inlined_call_operand.vmem [shape: f32[1,128], index: 4, kind: input, shape index: {}]
  %s5 = inlined_call_operand.vmem [shape: bf16[128,128], index: 5, kind: input, shape index: {}]
  %s6 = inlined_call_operand.vmem [shape: f32[1,128], index: 6, kind: input, shape index: {}]
  %s7 = inlined_call_operand.vmem [shape: f32[256,3], index: 7, kind: output, shape index: {}]
  %s8 = sld [smem:[#allocation0]]
  $region38: #{_policy_forward_tb.1} parent=0
    _
  %s10 = ssub.s32 1, %s8
  %s11 = scalar_select 0, %s10, %s8
  // Predicated region
  $region2: #{_policy_forward_tb.1} parent=0 // pred_check
    _
  $region3: #{_policy_forward_tb.1} parent=0 // pred_check_branch
    %13 = sbr.rel (0) target = $region5
  $region4: #{_policy_forward_tb.1} parent=0 // pred_region
    _
  $region5: #{_policy_forward_tb.1} parent=0 // pred_fallthru
    _
  // Predicated region
  $region6: #{_policy_forward_tb.1} parent=0 // pred_check
    _
  $region7: #{_policy_forward_tb.1} parent=0 // pred_check_branch
    %15 = sbr.rel (0) target = $region9
  $region8: #{_policy_forward_tb.1} parent=0 // pred_region
    _
  $region9: #{_policy_forward_tb.1} parent=0 // pred_fallthru
    _
  // Predicated region
  $region10: #{_policy_forward_tb.1} parent=0 // pred_check
    _
  $region11: #{_policy_forward_tb.1} parent=0 // pred_check_branch
    %17 = sbr.rel (0) target = $region13
  $region12: #{_policy_forward_tb.1} parent=0 // pred_region
    _
  $region13: #{_policy_forward_tb.1} parent=0 // pred_fallthru
    _
  // Predicated region
  $region14: #{_policy_forward_tb.1} parent=0 // pred_check
    _
  $region15: #{_policy_forward_tb.1} parent=0 // pred_check_branch
    %19 = sbr.rel (0) target = $region17
  $region16: #{_policy_forward_tb.1} parent=0 // pred_region
    _
  $region17: #{_policy_forward_tb.1} parent=0 // pred_fallthru
    _
  // Predicated region
  $region18: #{_policy_forward_tb.1} parent=0 // pred_check
    _
  $region19: #{_policy_forward_tb.1} parent=0 // pred_check_branch
    %21 = sbr.rel (0) target = $region21
  $region20: #{_policy_forward_tb.1} parent=0 // pred_region
    _
  $region21: #{_policy_forward_tb.1} parent=0 // pred_fallthru
    _
  // Predicated region
  $region22: #{_policy_forward_tb.1} parent=0 // pred_check
    _
  $region23: #{_policy_forward_tb.1} parent=0 // pred_check_branch
    %23 = sbr.rel (0) target = $region25
  $region24: #{_policy_forward_tb.1} parent=0 // pred_region
    _
  $region25: #{_policy_forward_tb.1} parent=0 // pred_fallthru
    _
  // Predicated region
  $region26: #{_policy_forward_tb.1} parent=0 // pred_check
    _
  $region27: #{_policy_forward_tb.1} parent=0 // pred_check_branch
    %25 = sbr.rel (0) target = $region29
  $region28: #{_policy_forward_tb.1} parent=0 // pred_region
    _
  $region29: #{_policy_forward_tb.1} parent=0 // pred_fallthru
    _
  %v27 = vld [vmem:[%s0] sm:$0xff]
  %v28 = vld [vmem:[%s0 + $0x8] sm:$0xff]
  %v29 = vld [vmem:[%s0 + $0x10] sm:$0xff]
  %v30 = vld [vmem:[%s0 + $0x18] sm:$0xff]
  %v31 = vld [vmem:[%s0 + $0x20] sm:$0xff]
  %v32 = vld [vmem:[%s0 + $0x28] sm:$0xff]
  %v33 = vld [vmem:[%s0 + $0x30] sm:$0xff]
  %v34 = vld [vmem:[%s0 + $0x38] sm:$0xff]
  %v35 = vld [vmem:[%s0 + $0x40] sm:$0xff]
  %v36 = vld [vmem:[%s0 + $0x48] sm:$0xff]
  %v37 = vld [vmem:[%s0 + $0x50] sm:$0xff]
  %v38 = vld [vmem:[%s0 + $0x58] sm:$0xff]
  %v39 = vld [vmem:[%s0 + $0x60] sm:$0xff]
  %v40 = vld [vmem:[%s0 + $0x68] sm:$0xff]
  %v41 = vld [vmem:[%s0 + $0x70] sm:$0xff]
  %v42 = vld [vmem:[%s0 + $0x78] sm:$0xff]
  %v43 = vld [vmem:[%s0 + $0x80] sm:$0xff]
  %v44 = vld [vmem:[%s0 + $0x88] sm:$0xff]
  %v45 = vld [vmem:[%s0 + $0x90] sm:$0xff]
  %v46 = vld [vmem:[%s0 + $0x98] sm:$0xff]
  %v47 = vld [vmem:[%s0 + $0xa0] sm:$0xff]
  %v48 = vld [vmem:[%s0 + $0xa8] sm:$0xff]
  %v49 = vld [vmem:[%s0 + $0xb0] sm:$0xff]
  %v50 = vld [vmem:[%s0 + $0xb8] sm:$0xff]
  %v51 = vld [vmem:[%s0 + $0xc0] sm:$0xff]
  %v52 = vld [vmem:[%s0 + $0xc8] sm:$0xff]
  %v53 = vld [vmem:[%s0 + $0xd0] sm:$0xff]
  %v54 = vld [vmem:[%s0 + $0xd8] sm:$0xff]
  %v55 = vld [vmem:[%s0 + $0xe0] sm:$0xff]
  %v56 = vld [vmem:[%s0 + $0xe8] sm:$0xff]
  %v57 = vld [vmem:[%s0 + $0xf0] sm:$0xff]
  %v58 = vld [vmem:[%s0 + $0xf8] sm:$0xff]
  %v59 = vld [vmem:[%s1] sm:$0x1]
  %61 = vset.pattern.permute.xlu0 0
  %62 = vperm.xlu0 %61, %v27
  %v63 = vpop.permute.xlu0 %62
  %66 = vset.pattern.permute.xlu0 0
  %67 = vperm.xlu0 %66, %v28
  %v68 = vpop.permute.xlu0 %67
  %71 = vset.pattern.permute.xlu0 0
  %72 = vperm.xlu0 %71, %v29
  %v73 = vpop.permute.xlu0 %72
  %76 = vset.pattern.permute.xlu0 0
  %77 = vperm.xlu0 %76, %v30
  %v78 = vpop.permute.xlu0 %77
  %81 = vset.pattern.permute.xlu0 0
  %82 = vperm.xlu0 %81, %v31
  %v83 = vpop.permute.xlu0 %82
  %86 = vset.pattern.permute.xlu0 0
  %87 = vperm.xlu0 %86, %v32
  %v88 = vpop.permute.xlu0 %87
  %91 = vset.pattern.permute.xlu0 0
  %92 = vperm.xlu0 %91, %v33
  %v93 = vpop.permute.xlu0 %92
  %96 = vset.pattern.permute.xlu0 0
  %97 = vperm.xlu0 %96, %v34
  %v98 = vpop.permute.xlu0 %97
  %101 = vset.pattern.permute.xlu0 0
  %102 = vperm.xlu0 %101, %v35
  %v103 = vpop.permute.xlu0 %102
  %106 = vset.pattern.permute.xlu0 0
  %107 = vperm.xlu0 %106, %v36
  %v108 = vpop.permute.xlu0 %107
  %111 = vset.pattern.permute.xlu0 0
  %112 = vperm.xlu0 %111, %v37
  %v113 = vpop.permute.xlu0 %112
  %116 = vset.pattern.permute.xlu0 0
  %117 = vperm.xlu0 %116, %v38
  %v118 = vpop.permute.xlu0 %117
  %121 = vset.pattern.permute.xlu0 0
  %122 = vperm.xlu0 %121, %v39
  %v123 = vpop.permute.xlu0 %122
  %126 = vset.pattern.permute.xlu0 0
  %127 = vperm.xlu0 %126, %v40
  %v128 = vpop.permute.xlu0 %127
  %131 = vset.pattern.permute.xlu0 0
  %132 = vperm.xlu0 %131, %v41
  %v133 = vpop.permute.xlu0 %132
  %136 = vset.pattern.permute.xlu0 0
  %137 = vperm.xlu0 %136, %v42
  %v138 = vpop.permute.xlu0 %137
  %141 = vset.pattern.permute.xlu0 0
  %142 = vperm.xlu0 %141, %v43
  %v143 = vpop.permute.xlu0 %142
  %146 = vset.pattern.permute.xlu0 0
  %147 = vperm.xlu0 %146, %v44
  %v148 = vpop.permute.xlu0 %147
  %151 = vset.pattern.permute.xlu0 0
  %152 = vperm.xlu0 %151, %v45
  %v153 = vpop.permute.xlu0 %152
  %156 = vset.pattern.permute.xlu0 0
  %157 = vperm.xlu0 %156, %v46
  %v158 = vpop.permute.xlu0 %157
  %161 = vset.pattern.permute.xlu0 0
  %162 = vperm.xlu0 %161, %v47
  %v163 = vpop.permute.xlu0 %162
  %166 = vset.pattern.permute.xlu0 0
  %167 = vperm.xlu0 %166, %v48
  %v168 = vpop.permute.xlu0 %167
  %171 = vset.pattern.permute.xlu0 0
  %172 = vperm.xlu0 %171, %v49
  %v173 = vpop.permute.xlu0 %172
  %176 = vset.pattern.permute.xlu0 0
  %177 = vperm.xlu0 %176, %v50
  %v178 = vpop.permute.xlu0 %177
  %181 = vset.pattern.permute.xlu0 0
  %182 = vperm.xlu0 %181, %v51
  %v183 = vpop.permute.xlu0 %182
  %186 = vset.pattern.permute.xlu0 0
  %187 = vperm.xlu0 %186, %v52
  %v188 = vpop.permute.xlu0 %187
  %191 = vset.pattern.permute.xlu0 0
  %192 = vperm.xlu0 %191, %v53
  %v193 = vpop.permute.xlu0 %192
  %196 = vset.pattern.permute.xlu0 0
  %197 = vperm.xlu0 %196, %v54
  %v198 = vpop.permute.xlu0 %197
  %201 = vset.pattern.permute.xlu0 0
  %202 = vperm.xlu0 %201, %v55
  %v203 = vpop.permute.xlu0 %202
  %206 = vset.pattern.permute.xlu0 0
  %207 = vperm.xlu0 %206, %v56
  %v208 = vpop.permute.xlu0 %207
  %211 = vset.pattern.permute.xlu0 0
  %212 = vperm.xlu0 %211, %v57
  %v213 = vpop.permute.xlu0 %212
  %216 = vset.pattern.permute.xlu0 0
  %217 = vperm.xlu0 %216, %v58
  %v218 = vpop.permute.xlu0 %217
  %v220 = vlaneseq
  %v221 = vshrl.u32 %v220, 7
  %v222 = vsub.s32 0, %v221
  %v223 = vrot.slane %v59, %v222
  %v224 = vmul.f32 %v63, %v223
  %v225 = vmul.f32 %v68, %v223
  %v226 = vmul.f32 %v73, %v223
  %v227 = vmul.f32 %v78, %v223
  %v228 = vmul.f32 %v83, %v223
  %v229 = vmul.f32 %v88, %v223
  %v230 = vmul.f32 %v93, %v223
  %v231 = vmul.f32 %v98, %v223
  %v232 = vmul.f32 %v103, %v223
  %v233 = vmul.f32 %v108, %v223
  %v234 = vmul.f32 %v113, %v223
  %v235 = vmul.f32 %v118, %v223
  %v236 = vmul.f32 %v123, %v223
  %v237 = vmul.f32 %v128, %v223
  %v238 = vmul.f32 %v133, %v223
  %v239 = vmul.f32 %v138, %v223
  %v240 = vmul.f32 %v143, %v223
  %v241 = vmul.f32 %v148, %v223
  %v242 = vmul.f32 %v153, %v223
  %v243 = vmul.f32 %v158, %v223
  %v244 = vmul.f32 %v163, %v223
  %v245 = vmul.f32 %v168, %v223
  %v246 = vmul.f32 %v173, %v223
  %v247 = vmul.f32 %v178, %v223
  %v248 = vmul.f32 %v183, %v223
  %v249 = vmul.f32 %v188, %v223
  %v250 = vmul.f32 %v193, %v223
  %v251 = vmul.f32 %v198, %v223
  %v252 = vmul.f32 %v203, %v223
  %v253 = vmul.f32 %v208, %v223
  %v254 = vmul.f32 %v213, %v223
  %v255 = vmul.f32 %v218, %v223
  %v256 = vld [vmem:[%s1 + $0x1] sm:$0x1]
  %257 = vset.pattern.permute.xlu0 1
  %258 = vperm.xlu0 %257, %v27
  %v259 = vpop.permute.xlu0 %258
  %261 = vset.pattern.permute.xlu0 1
  %262 = vperm.xlu0 %261, %v28
  %v263 = vpop.permute.xlu0 %262
  %265 = vset.pattern.permute.xlu0 1
  %266 = vperm.xlu0 %265, %v29
  %v267 = vpop.permute.xlu0 %266
  %269 = vset.pattern.permute.xlu0 1
  %270 = vperm.xlu0 %269, %v30
  %v271 = vpop.permute.xlu0 %270
  %273 = vset.pattern.permute.xlu0 1
  %274 = vperm.xlu0 %273, %v31
  %v275 = vpop.permute.xlu0 %274
  %277 = vset.pattern.permute.xlu0 1
  %278 = vperm.xlu0 %277, %v32
  %v279 = vpop.permute.xlu0 %278
  %281 = vset.pattern.permute.xlu0 1
  %282 = vperm.xlu0 %281, %v33
  %v283 = vpop.permute.xlu0 %282
  %285 = vset.pattern.permute.xlu0 1
  %286 = vperm.xlu0 %285, %v34
  %v287 = vpop.permute.xlu0 %286
  %289 = vset.pattern.permute.xlu0 1
  %290 = vperm.xlu0 %289, %v35
  %v291 = vpop.permute.xlu0 %290
  %293 = vset.pattern.permute.xlu0 1
  %294 = vperm.xlu0 %293, %v36
  %v295 = vpop.permute.xlu0 %294
  %297 = vset.pattern.permute.xlu0 1
  %298 = vperm.xlu0 %297, %v37
  %v299 = vpop.permute.xlu0 %298
  %301 = vset.pattern.permute.xlu0 1
  %302 = vperm.xlu0 %301, %v38
  %v303 = vpop.permute.xlu0 %302
  %305 = vset.pattern.permute.xlu0 1
  %306 = vperm.xlu0 %305, %v39
  %v307 = vpop.permute.xlu0 %306
  %309 = vset.pattern.permute.xlu0 1
  %310 = vperm.xlu0 %309, %v40
  %v311 = vpop.permute.xlu0 %310
  %313 = vset.pattern.permute.xlu0 1
  %314 = vperm.xlu0 %313, %v41
  %v315 = vpop.permute.xlu0 %314
  %317 = vset.pattern.permute.xlu0 1
  %318 = vperm.xlu0 %317, %v42
  %v319 = vpop.permute.xlu0 %318
  %321 = vset.pattern.permute.xlu0 1
  %322 = vperm.xlu0 %321, %v43
  %v323 = vpop.permute.xlu0 %322
  %325 = vset.pattern.permute.xlu0 1
  %326 = vperm.xlu0 %325, %v44
  %v327 = vpop.permute.xlu0 %326
  %329 = vset.pattern.permute.xlu0 1
  %330 = vperm.xlu0 %329, %v45
  %v331 = vpop.permute.xlu0 %330
  %333 = vset.pattern.permute.xlu0 1
  %334 = vperm.xlu0 %333, %v46
  %v335 = vpop.permute.xlu0 %334
  %337 = vset.pattern.permute.xlu0 1
  %338 = vperm.xlu0 %337, %v47
  %v339 = vpop.permute.xlu0 %338
  %341 = vset.pattern.permute.xlu0 1
  %342 = vperm.xlu0 %341, %v48
  %v343 = vpop.permute.xlu0 %342
  %345 = vset.pattern.permute.xlu0 1
  %346 = vperm.xlu0 %345, %v49
  %v347 = vpop.permute.xlu0 %346
  %349 = vset.pattern.permute.xlu0 1
  %350 = vperm.xlu0 %349, %v50
  %v351 = vpop.permute.xlu0 %350
  %353 = vset.pattern.permute.xlu0 1
  %354 = vperm.xlu0 %353, %v51
  %v355 = vpop.permute.xlu0 %354
  %357 = vset.pattern.permute.xlu0 1
  %358 = vperm.xlu0 %357, %v52
  %v359 = vpop.permute.xlu0 %358
  %361 = vset.pattern.permute.xlu0 1
  %362 = vperm.xlu0 %361, %v53
  %v363 = vpop.permute.xlu0 %362
  %365 = vset.pattern.permute.xlu0 1
  %366 = vperm.xlu0 %365, %v54
  %v367 = vpop.permute.xlu0 %366
  %369 = vset.pattern.permute.xlu0 1
  %370 = vperm.xlu0 %369, %v55
  %v371 = vpop.permute.xlu0 %370
  %373 = vset.pattern.permute.xlu0 1
  %374 = vperm.xlu0 %373, %v56
  %v375 = vpop.permute.xlu0 %374
  %377 = vset.pattern.permute.xlu0 1
  %378 = vperm.xlu0 %377, %v57
  %v379 = vpop.permute.xlu0 %378
  %381 = vset.pattern.permute.xlu0 1
  %382 = vperm.xlu0 %381, %v58
  %v383 = vpop.permute.xlu0 %382
  %v385 = vlaneseq
  %v386 = vshrl.u32 %v385, 7
  %v387 = vsub.s32 0, %v386
  %v388 = vrot.slane %v256, %v387
  %v389 = vmul.f32 %v259, %v388
  %v390 = vmul.f32 %v263, %v388
  %v391 = vmul.f32 %v267, %v388
  %v392 = vmul.f32 %v271, %v388
  %v393 = vmul.f32 %v275, %v388
  %v394 = vmul.f32 %v279, %v388
  %v395 = vmul.f32 %v283, %v388
  %v396 = vmul.f32 %v287, %v388
  %v397 = vmul.f32 %v291, %v388
  %v398 = vmul.f32 %v295, %v388
  %v399 = vmul.f32 %v299, %v388
  %v400 = vmul.f32 %v303, %v388
  %v401 = vmul.f32 %v307, %v388
  %v402 = vmul.f32 %v311, %v388
  %v403 = vmul.f32 %v315, %v388
  %v404 = vmul.f32 %v319, %v388
  %v405 = vmul.f32 %v323, %v388
  %v406 = vmul.f32 %v327, %v388
  %v407 = vmul.f32 %v331, %v388
  %v408 = vmul.f32 %v335, %v388
  %v409 = vmul.f32 %v339, %v388
  %v410 = vmul.f32 %v343, %v388
  %v411 = vmul.f32 %v347, %v388
  %v412 = vmul.f32 %v351, %v388
  %v413 = vmul.f32 %v355, %v388
  %v414 = vmul.f32 %v359, %v388
  %v415 = vmul.f32 %v363, %v388
  %v416 = vmul.f32 %v367, %v388
  %v417 = vmul.f32 %v371, %v388
  %v418 = vmul.f32 %v375, %v388
  %v419 = vmul.f32 %v379, %v388
  %v420 = vmul.f32 %v383, %v388
  %v421 = vadd.f32 %v224, %v389
  %v422 = vadd.f32 %v225, %v390
  %v423 = vadd.f32 %v226, %v391
  %v424 = vadd.f32 %v227, %v392
  %v425 = vadd.f32 %v228, %v393
  %v426 = vadd.f32 %v229, %v394
  %v427 = vadd.f32 %v230, %v395
  %v428 = vadd.f32 %v231, %v396
  %v429 = vadd.f32 %v232, %v397
  %v430 = vadd.f32 %v233, %v398
  %v431 = vadd.f32 %v234, %v399
  %v432 = vadd.f32 %v235, %v400
  %v433 = vadd.f32 %v236, %v401
  %v434 = vadd.f32 %v237, %v402
  %v435 = vadd.f32 %v238, %v403
  %v436 = vadd.f32 %v239, %v404
  %v437 = vadd.f32 %v240, %v405
  %v438 = vadd.f32 %v241, %v406
  %v439 = vadd.f32 %v242, %v407
  %v440 = vadd.f32 %v243, %v408
  %v441 = vadd.f32 %v244, %v409
  %v442 = vadd.f32 %v245, %v410
  %v443 = vadd.f32 %v246, %v411
  %v444 = vadd.f32 %v247, %v412
  %v445 = vadd.f32 %v248, %v413
  %v446 = vadd.f32 %v249, %v414
  %v447 = vadd.f32 %v250, %v415
  %v448 = vadd.f32 %v251, %v416
  %v449 = vadd.f32 %v252, %v417
  %v450 = vadd.f32 %v253, %v418
  %v451 = vadd.f32 %v254, %v419
  %v452 = vadd.f32 %v255, %v420
  %v453 = vld [vmem:[%s2] sm:$0x1]
  %v455 = vlaneseq
  %v456 = vshrl.u32 %v455, 7
  %v457 = vsub.s32 0, %v456
  %v458 = vrot.slane %v453, %v457
  %v460 = vadd.f32 %v421, %v458
  %v461 = vadd.f32 %v422, %v458
  %v462 = vadd.f32 %v423, %v458
  %v463 = vadd.f32 %v424, %v458
  %v464 = vadd.f32 %v425, %v458
  %v465 = vadd.f32 %v426, %v458
  %v466 = vadd.f32 %v427, %v458
  %v467 = vadd.f32 %v428, %v458
  %v468 = vadd.f32 %v429, %v458
  %v469 = vadd.f32 %v430, %v458
  %v470 = vadd.f32 %v431, %v458
  %v471 = vadd.f32 %v432, %v458
  %v472 = vadd.f32 %v433, %v458
  %v473 = vadd.f32 %v434, %v458
  %v474 = vadd.f32 %v435, %v458
  %v475 = vadd.f32 %v436, %v458
  %v476 = vadd.f32 %v437, %v458
  %v477 = vadd.f32 %v438, %v458
  %v478 = vadd.f32 %v439, %v458
  %v479 = vadd.f32 %v440, %v458
  %v480 = vadd.f32 %v441, %v458
  %v481 = vadd.f32 %v442, %v458
  %v482 = vadd.f32 %v443, %v458
  %v483 = vadd.f32 %v444, %v458
  %v484 = vadd.f32 %v445, %v458
  %v485 = vadd.f32 %v446, %v458
  %v486 = vadd.f32 %v447, %v458
  %v487 = vadd.f32 %v448, %v458
  %v488 = vadd.f32 %v449, %v458
  %v489 = vadd.f32 %v450, %v458
  %v490 = vadd.f32 %v451, %v458
  %v491 = vadd.f32 %v452, %v458
  %v492 = vmax.f32 %v460, 0.0
  %v493 = vmax.f32 %v461, 0.0
  %v494 = vmax.f32 %v462, 0.0
  %v495 = vmax.f32 %v463, 0.0
  %v496 = vmax.f32 %v464, 0.0
  %v497 = vmax.f32 %v465, 0.0
  %v498 = vmax.f32 %v466, 0.0
  %v499 = vmax.f32 %v467, 0.0
  %v500 = vmax.f32 %v468, 0.0
  %v501 = vmax.f32 %v469, 0.0
  %v502 = vmax.f32 %v470, 0.0
  %v503 = vmax.f32 %v471, 0.0
  %v504 = vmax.f32 %v472, 0.0
  %v505 = vmax.f32 %v473, 0.0
  %v506 = vmax.f32 %v474, 0.0
  %v507 = vmax.f32 %v475, 0.0
  %v508 = vmax.f32 %v476, 0.0
  %v509 = vmax.f32 %v477, 0.0
  %v510 = vmax.f32 %v478, 0.0
  %v511 = vmax.f32 %v479, 0.0
  %v512 = vmax.f32 %v480, 0.0
  %v513 = vmax.f32 %v481, 0.0
  %v514 = vmax.f32 %v482, 0.0
  %v515 = vmax.f32 %v483, 0.0
  %v516 = vmax.f32 %v484, 0.0
  %v517 = vmax.f32 %v485, 0.0
  %v518 = vmax.f32 %v486, 0.0
  %v519 = vmax.f32 %v487, 0.0
  %v520 = vmax.f32 %v488, 0.0
  %v521 = vmax.f32 %v489, 0.0
  %v522 = vmax.f32 %v490, 0.0
  %v523 = vmax.f32 %v491, 0.0
  %v524 = vpack.c.bf16 %v493, %v492
  %v525 = vpack.c.bf16 %v495, %v494
  %v526 = vpack.c.bf16 %v497, %v496
  %v527 = vpack.c.bf16 %v499, %v498
  %v528 = vpack.c.bf16 %v501, %v500
  %v529 = vpack.c.bf16 %v503, %v502
  %v530 = vpack.c.bf16 %v505, %v504
  %v531 = vpack.c.bf16 %v507, %v506
  %v532 = vpack.c.bf16 %v509, %v508
  %v533 = vpack.c.bf16 %v511, %v510
  %v534 = vpack.c.bf16 %v513, %v512
  %v535 = vpack.c.bf16 %v515, %v514
  %v536 = vpack.c.bf16 %v517, %v516
  %v537 = vpack.c.bf16 %v519, %v518
  %v538 = vpack.c.bf16 %v521, %v520
  %v539 = vpack.c.bf16 %v523, %v522
  %v540 = vld [vmem:[%s3] sm:$0xf]
  %v541 = vld [vmem:[%s3 + $0x4] sm:$0xf]
  %v542 = vld [vmem:[%s3 + $0x8] sm:$0xf]
  %v543 = vld [vmem:[%s3 + $0xc] sm:$0xf]
  %v544 = vld [vmem:[%s3 + $0x10] sm:$0xf]
  %v545 = vld [vmem:[%s3 + $0x14] sm:$0xf]
  %v546 = vld [vmem:[%s3 + $0x18] sm:$0xf]
  %v547 = vld [vmem:[%s3 + $0x1c] sm:$0xf]
  %v548 = vld [vmem:[%s3 + $0x20] sm:$0xf]
  %v549 = vld [vmem:[%s3 + $0x24] sm:$0xf]
  %v550 = vld [vmem:[%s3 + $0x28] sm:$0xf]
  %v551 = vld [vmem:[%s3 + $0x2c] sm:$0xf]
  %v552 = vld [vmem:[%s3 + $0x30] sm:$0xf]
  %v553 = vld [vmem:[%s3 + $0x34] sm:$0xf]
  %v554 = vld [vmem:[%s3 + $0x38] sm:$0xf]
  %v555 = vld [vmem:[%s3 + $0x3c] sm:$0xf]
  %v556 = vld [vmem:[%s4] sm:$0x1]
  %v558 = vlaneseq
  %v559 = vshrl.u32 %v558, 7
  %v560 = vsub.s32 0, %v559
  %v561 = vrot.slane %v556, %v560
  %v579 = vunpack.c.l.b16 %v540
  %v580 = vunpack.c.l.b16 %v541
  %v581 = vunpack.c.l.b16 %v542
  %v582 = vunpack.c.l.b16 %v543
  %v583 = vunpack.c.l.b16 %v544
  %v584 = vunpack.c.l.b16 %v545
  %v585 = vunpack.c.l.b16 %v546
  %v586 = vunpack.c.l.b16 %v547
  %v587 = vunpack.c.l.b16 %v548
  %v588 = vunpack.c.l.b16 %v549
  %v589 = vunpack.c.l.b16 %v550
  %v590 = vunpack.c.l.b16 %v551
  %v591 = vunpack.c.l.b16 %v552
  %v592 = vunpack.c.l.b16 %v553
  %v593 = vunpack.c.l.b16 %v554
  %v594 = vunpack.c.l.b16 %v555
  %v595 = vpack.c.b16 %v580, %v579
  %v596 = vpack.c.b16 %v582, %v581
  %v597 = vpack.c.b16 %v584, %v583
  %v598 = vpack.c.b16 %v586, %v585
  %v599 = vpack.c.b16 %v588, %v587
  %v600 = vpack.c.b16 %v590, %v589
  %v601 = vpack.c.b16 %v592, %v591
  %v602 = vpack.c.b16 %v594, %v593
  %611 = vmatprep.subr.bf16.mxu0 0
  %612 = vmatpush1.bf16.msra.mxu0 %v595
  %613 = vmatprep.subr.bf16.mxu0 0
  %614 = vmatpush1.bf16.msra.mxu0 %v596
  %615 = vmatprep.subr.bf16.mxu0 0
  %616 = vmatpush1.bf16.msra.mxu0 %v597
  %617 = vmatprep.subr.bf16.mxu0 0
  %618 = vmatpush1.bf16.msra.mxu0 %v598
  %619 = vmatprep.subr.bf16.mxu0 0
  %620 = vmatpush1.bf16.msra.mxu0 %v599
  %621 = vmatprep.subr.bf16.mxu0 0
  %622 = vmatpush1.bf16.msra.mxu0 %v600
  %623 = vmatprep.subr.bf16.mxu0 0
  %624 = vmatpush1.bf16.msra.mxu0 %v601
  %625 = vmatprep.subr.bf16.mxu0 0
  %626 = vmatpush1.bf16.msra.mxu0 %v602
  %627 = vmatprep.subr.bf16.mxu0 0
  %628 = vmatpush1.bf16.msra.mxu0 0
  %629 = vmatprep.subr.bf16.mxu0 0
  %630 = vmatpush1.bf16.msra.mxu0 0
  %631 = vmatprep.subr.bf16.mxu0 0
  %632 = vmatpush1.bf16.msra.mxu0 0
  %633 = vmatprep.subr.bf16.mxu0 0
  %634 = vmatpush1.bf16.msra.mxu0 0
  %635 = vmatprep.subr.bf16.mxu0 0
  %636 = vmatpush1.bf16.msra.mxu0 0
  %637 = vmatprep.subr.bf16.mxu0 0
  %638 = vmatpush1.bf16.msra.mxu0 0
  %639 = vmatprep.subr.bf16.mxu0 0
  %640 = vmatpush1.bf16.msra.mxu0 0
  %641 = vmatprep.subr.bf16.mxu0 0
  %642 = vmatpush1.bf16.msra.mxu0 0
  %643 = vmatprep.mubr.bf16.mxu0 0
  %644 = vmatmul.mubr.bf16.gmra.mrb[0].mxu0 %v524
  %v645 = vpop.f32.mrb[0].mxu0
  %v646 = vadd.f32 %v561, %v645
  %v647 = vpop.f32.mrb[0].mxu0
  %v648 = vpop.f32.mrb[0].mxu0
  %v649 = vadd.f32 %v561, %v648
  %v650 = vpop.f32.mrb[0].mxu0
  %651 = vmatprep.mubr.bf16.mxu0 0
  %652 = vmatmul.mubr.bf16.gmra.mrb[0].mxu0 %v525
  %v653 = vpop.f32.mrb[0].mxu0
  %v654 = vadd.f32 %v561, %v653
  %v655 = vpop.f32.mrb[0].mxu0
  %v656 = vpop.f32.mrb[0].mxu0
  %v657 = vadd.f32 %v561, %v656
  %v658 = vpop.f32.mrb[0].mxu0
  %659 = vmatprep.mubr.bf16.mxu0 0
  %660 = vmatmul.mubr.bf16.gmra.mrb[0].mxu0 %v526
  %v661 = vpop.f32.mrb[0].mxu0
  %v662 = vadd.f32 %v561, %v661
  %v663 = vpop.f32.mrb[0].mxu0
  %v664 = vpop.f32.mrb[0].mxu0
  %v665 = vadd.f32 %v561, %v664
  %v666 = vpop.f32.mrb[0].mxu0
  %667 = vmatprep.mubr.bf16.mxu0 0
  %668 = vmatmul.mubr.bf16.gmra.mrb[0].mxu0 %v527
  %v669 = vpop.f32.mrb[0].mxu0
  %v670 = vadd.f32 %v561, %v669
  %v671 = vpop.f32.mrb[0].mxu0
  %v672 = vpop.f32.mrb[0].mxu0
  %v673 = vadd.f32 %v561, %v672
  %v674 = vpop.f32.mrb[0].mxu0
  %675 = vmatprep.mubr.bf16.mxu0 0
  %676 = vmatmul.mubr.bf16.gmra.mrb[0].mxu0 %v528
  %v677 = vpop.f32.mrb[0].mxu0
  %v678 = vadd.f32 %v561, %v677
  %v679 = vpop.f32.mrb[0].mxu0
  %v680 = vpop.f32.mrb[0].mxu0
  %v681 = vadd.f32 %v561, %v680
  %v682 = vpop.f32.mrb[0].mxu0
  %683 = vmatprep.mubr.bf16.mxu0 0
  %684 = vmatmul.mubr.bf16.gmra.mrb[0].mxu0 %v529
  %v685 = vpop.f32.mrb[0].mxu0
  %v686 = vadd.f32 %v561, %v685
  %v687 = vpop.f32.mrb[0].mxu0
  %v688 = vpop.f32.mrb[0].mxu0
  %v689 = vadd.f32 %v561, %v688
  %v690 = vpop.f32.mrb[0].mxu0
  %691 = vmatprep.mubr.bf16.mxu0 0
  %692 = vmatmul.mubr.bf16.gmra.mrb[0].mxu0 %v530
  %v693 = vpop.f32.mrb[0].mxu0
  %v694 = vadd.f32 %v561, %v693
  %v695 = vpop.f32.mrb[0].mxu0
  %v696 = vpop.f32.mrb[0].mxu0
  %v697 = vadd.f32 %v561, %v696
  %v698 = vpop.f32.mrb[0].mxu0
  %699 = vmatprep.mubr.bf16.mxu0 0
  %700 = vmatmul.mubr.bf16.gmra.mrb[0].mxu0 %v531
  %v701 = vpop.f32.mrb[0].mxu0
  %v702 = vadd.f32 %v561, %v701
  %v703 = vpop.f32.mrb[0].mxu0
  %v704 = vpop.f32.mrb[0].mxu0
  %v705 = vadd.f32 %v561, %v704
  %v706 = vpop.f32.mrb[0].mxu0
  %707 = vmatprep.mubr.bf16.mxu0 0
  %708 = vmatmul.mubr.bf16.gmra.mrb[0].mxu0 %v532
  %v709 = vpop.f32.mrb[0].mxu0
  %v710 = vadd.f32 %v561, %v709
  %v711 = vpop.f32.mrb[0].mxu0
  %v712 = vpop.f32.mrb[0].mxu0
  %v713 = vadd.f32 %v561, %v712
  %v714 = vpop.f32.mrb[0].mxu0
  %715 = vmatprep.mubr.bf16.mxu0 0
  %716 = vmatmul.mubr.bf16.gmra.mrb[0].mxu0 %v533
  %v717 = vpop.f32.mrb[0].mxu0
  %v718 = vadd.f32 %v561, %v717
  %v719 = vpop.f32.mrb[0].mxu0
  %v720 = vpop.f32.mrb[0].mxu0
  %v721 = vadd.f32 %v561, %v720
  %v722 = vpop.f32.mrb[0].mxu0
  %723 = vmatprep.mubr.bf16.mxu0 0
  %724 = vmatmul.mubr.bf16.gmra.mrb[0].mxu0 %v534
  %v725 = vpop.f32.mrb[0].mxu0
  %v726 = vadd.f32 %v561, %v725
  %v727 = vpop.f32.mrb[0].mxu0
  %v728 = vpop.f32.mrb[0].mxu0
  %v729 = vadd.f32 %v561, %v728
  %v730 = vpop.f32.mrb[0].mxu0
  %731 = vmatprep.mubr.bf16.mxu0 0
  %732 = vmatmul.mubr.bf16.gmra.mrb[0].mxu0 %v535
  %v733 = vpop.f32.mrb[0].mxu0
  %v734 = vadd.f32 %v561, %v733
  %v735 = vpop.f32.mrb[0].mxu0
  %v736 = vpop.f32.mrb[0].mxu0
  %v737 = vadd.f32 %v561, %v736
  %v738 = vpop.f32.mrb[0].mxu0
  %739 = vmatprep.mubr.bf16.mxu0 0
  %740 = vmatmul.mubr.bf16.gmra.mrb[0].mxu0 %v536
  %v741 = vpop.f32.mrb[0].mxu0
  %v742 = vadd.f32 %v561, %v741
  %v743 = vpop.f32.mrb[0].mxu0
  %v744 = vpop.f32.mrb[0].mxu0
  %v745 = vadd.f32 %v561, %v744
  %v746 = vpop.f32.mrb[0].mxu0
  %747 = vmatprep.mubr.bf16.mxu0 0
  %748 = vmatmul.mubr.bf16.gmra.mrb[0].mxu0 %v537
  %v749 = vpop.f32.mrb[0].mxu0
  %v750 = vadd.f32 %v561, %v749
  %v751 = vpop.f32.mrb[0].mxu0
  %v752 = vpop.f32.mrb[0].mxu0
  %v753 = vadd.f32 %v561, %v752
  %v754 = vpop.f32.mrb[0].mxu0
  %755 = vmatprep.mubr.bf16.mxu0 0
  %756 = vmatmul.mubr.bf16.gmra.mrb[0].mxu0 %v538
  %v757 = vpop.f32.mrb[0].mxu0
  %v758 = vadd.f32 %v561, %v757
  %v759 = vpop.f32.mrb[0].mxu0
  %v760 = vpop.f32.mrb[0].mxu0
  %v761 = vadd.f32 %v561, %v760
  %v762 = vpop.f32.mrb[0].mxu0
  %763 = vmatprep.mubr.bf16.mxu0 0
  %764 = vmatmul.mubr.bf16.gmra.mrb[0].mxu0 %v539
  %v765 = vpop.f32.mrb[0].mxu0
  %v766 = vadd.f32 %v561, %v765
  %v767 = vpop.f32.mrb[0].mxu0
  %v768 = vpop.f32.mrb[0].mxu0
  %v769 = vadd.f32 %v561, %v768
  %v770 = vpop.f32.mrb[0].mxu0
  %771 = vdwg.mxu0
  %v772 = vmax.f32 %v646, 0.0
  %v773 = vmax.f32 %v649, 0.0
  %v774 = vmax.f32 %v654, 0.0
  %v775 = vmax.f32 %v657, 0.0
  %v776 = vmax.f32 %v662, 0.0
  %v777 = vmax.f32 %v665, 0.0
  %v778 = vmax.f32 %v670, 0.0
  %v779 = vmax.f32 %v673, 0.0
  %v780 = vmax.f32 %v678, 0.0
  %v781 = vmax.f32 %v681, 0.0
  %v782 = vmax.f32 %v686, 0.0
  %v783 = vmax.f32 %v689, 0.0
  %v784 = vmax.f32 %v694, 0.0
  %v785 = vmax.f32 %v697, 0.0
  %v786 = vmax.f32 %v702, 0.0
  %v787 = vmax.f32 %v705, 0.0
  %v788 = vmax.f32 %v710, 0.0
  %v789 = vmax.f32 %v713, 0.0
  %v790 = vmax.f32 %v718, 0.0
  %v791 = vmax.f32 %v721, 0.0
  %v792 = vmax.f32 %v726, 0.0
  %v793 = vmax.f32 %v729, 0.0
  %v794 = vmax.f32 %v734, 0.0
  %v795 = vmax.f32 %v737, 0.0
  %v796 = vmax.f32 %v742, 0.0
  %v797 = vmax.f32 %v745, 0.0
  %v798 = vmax.f32 %v750, 0.0
  %v799 = vmax.f32 %v753, 0.0
  %v800 = vmax.f32 %v758, 0.0
  %v801 = vmax.f32 %v761, 0.0
  %v802 = vmax.f32 %v766, 0.0
  %v803 = vmax.f32 %v769, 0.0
  %v804 = vpack.c.bf16 %v773, %v772
  %v805 = vpack.c.bf16 %v775, %v774
  %v806 = vpack.c.bf16 %v777, %v776
  %v807 = vpack.c.bf16 %v779, %v778
  %v808 = vpack.c.bf16 %v781, %v780
  %v809 = vpack.c.bf16 %v783, %v782
  %v810 = vpack.c.bf16 %v785, %v784
  %v811 = vpack.c.bf16 %v787, %v786
  %v812 = vpack.c.bf16 %v789, %v788
  %v813 = vpack.c.bf16 %v791, %v790
  %v814 = vpack.c.bf16 %v793, %v792
  %v815 = vpack.c.bf16 %v795, %v794
  %v816 = vpack.c.bf16 %v797, %v796
  %v817 = vpack.c.bf16 %v799, %v798
  %v818 = vpack.c.bf16 %v801, %v800
  %v819 = vpack.c.bf16 %v803, %v802
  %v820 = vld [vmem:[%s5] sm:$0xf]
  %v821 = vld [vmem:[%s5 + $0x4] sm:$0xf]
  %v822 = vld [vmem:[%s5 + $0x8] sm:$0xf]
  %v823 = vld [vmem:[%s5 + $0xc] sm:$0xf]
  %v824 = vld [vmem:[%s5 + $0x10] sm:$0xf]
  %v825 = vld [vmem:[%s5 + $0x14] sm:$0xf]
  %v826 = vld [vmem:[%s5 + $0x18] sm:$0xf]
  %v827 = vld [vmem:[%s5 + $0x1c] sm:$0xf]
  %v828 = vld [vmem:[%s5 + $0x20] sm:$0xf]
  %v829 = vld [vmem:[%s5 + $0x24] sm:$0xf]
  %v830 = vld [vmem:[%s5 + $0x28] sm:$0xf]
  %v831 = vld [vmem:[%s5 + $0x2c] sm:$0xf]
  %v832 = vld [vmem:[%s5 + $0x30] sm:$0xf]
  %v833 = vld [vmem:[%s5 + $0x34] sm:$0xf]
  %v834 = vld [vmem:[%s5 + $0x38] sm:$0xf]
  %v835 = vld [vmem:[%s5 + $0x3c] sm:$0xf]
  %v836 = vld [vmem:[%s6] sm:$0x1]
  %v838 = vlaneseq
  %v839 = vshrl.u32 %v838, 7
  %v840 = vsub.s32 0, %v839
  %v841 = vrot.slane %v836, %v840
  %v859 = vunpack.c.l.b16 %v820
  %v860 = vunpack.c.l.b16 %v821
  %v861 = vunpack.c.l.b16 %v822
  %v862 = vunpack.c.l.b16 %v823
  %v863 = vunpack.c.l.b16 %v824
  %v864 = vunpack.c.l.b16 %v825
  %v865 = vunpack.c.l.b16 %v826
  %v866 = vunpack.c.l.b16 %v827
  %v867 = vunpack.c.l.b16 %v828
  %v868 = vunpack.c.l.b16 %v829
  %v869 = vunpack.c.l.b16 %v830
  %v870 = vunpack.c.l.b16 %v831
  %v871 = vunpack.c.l.b16 %v832
  %v872 = vunpack.c.l.b16 %v833
  %v873 = vunpack.c.l.b16 %v834
  %v874 = vunpack.c.l.b16 %v835
  %v875 = vpack.c.b16 %v860, %v859
  %v876 = vpack.c.b16 %v862, %v861
  %v877 = vpack.c.b16 %v864, %v863
  %v878 = vpack.c.b16 %v866, %v865
  %v879 = vpack.c.b16 %v868, %v867
  %v880 = vpack.c.b16 %v870, %v869
  %v881 = vpack.c.b16 %v872, %v871
  %v882 = vpack.c.b16 %v874, %v873
  %891 = vmatprep.subr.bf16.mxu0 0
  %892 = vmatpush1.bf16.msra.mxu0 %v875
  %893 = vmatprep.subr.bf16.mxu0 0
  %894 = vmatpush1.bf16.msra.mxu0 %v876
  %895 = vmatprep.subr.bf16.mxu0 0
  %896 = vmatpush1.bf16.msra.mxu0 %v877
  %897 = vmatprep.subr.bf16.mxu0 0
  %898 = vmatpush1.bf16.msra.mxu0 %v878
  %899 = vmatprep.subr.bf16.mxu0 0
  %900 = vmatpush1.bf16.msra.mxu0 %v879
  %901 = vmatprep.subr.bf16.mxu0 0
  %902 = vmatpush1.bf16.msra.mxu0 %v880
  %903 = vmatprep.subr.bf16.mxu0 0
  %904 = vmatpush1.bf16.msra.mxu0 %v881
  %905 = vmatprep.subr.bf16.mxu0 0
  %906 = vmatpush1.bf16.msra.mxu0 %v882
  %907 = vmatprep.subr.bf16.mxu0 0
  %908 = vmatpush1.bf16.msra.mxu0 0
  %909 = vmatprep.subr.bf16.mxu0 0
  %910 = vmatpush1.bf16.msra.mxu0 0
  %911 = vmatprep.subr.bf16.mxu0 0
  %912 = vmatpush1.bf16.msra.mxu0 0
  %913 = vmatprep.subr.bf16.mxu0 0
  %914 = vmatpush1.bf16.msra.mxu0 0
  %915 = vmatprep.subr.bf16.mxu0 0
  %916 = vmatpush1.bf16.msra.mxu0 0
  %917 = vmatprep.subr.bf16.mxu0 0
  %918 = vmatpush1.bf16.msra.mxu0 0
  %919 = vmatprep.subr.bf16.mxu0 0
  %920 = vmatpush1.bf16.msra.mxu0 0
  %921 = vmatprep.subr.bf16.mxu0 0
  %922 = vmatpush1.bf16.msra.mxu0 0
  %923 = vmatprep.mubr.bf16.mxu0 0
  %924 = vmatmul.mubr.bf16.gmra.mrb[0].mxu0 %v804
  %v925 = vpop.f32.mrb[0].mxu0
  %v926 = vadd.f32 %v841, %v925
  %v927 = vpop.f32.mrb[0].mxu0
  %v928 = vpop.f32.mrb[0].mxu0
  %v929 = vadd.f32 %v841, %v928
  %v930 = vpop.f32.mrb[0].mxu0
  %931 = vmatprep.mubr.bf16.mxu0 0
  %932 = vmatmul.mubr.bf16.gmra.mrb[0].mxu0 %v805
  %v933 = vpop.f32.mrb[0].mxu0
  %v934 = vadd.f32 %v841, %v933
  %v935 = vpop.f32.mrb[0].mxu0
  %v936 = vpop.f32.mrb[0].mxu0
  %v937 = vadd.f32 %v841, %v936
  %v938 = vpop.f32.mrb[0].mxu0
  %939 = vmatprep.mubr.bf16.mxu0 0
  %940 = vmatmul.mubr.bf16.gmra.mrb[0].mxu0 %v806
  %v941 = vpop.f32.mrb[0].mxu0
  %v942 = vadd.f32 %v841, %v941
  %v943 = vpop.f32.mrb[0].mxu0
  %v944 = vpop.f32.mrb[0].mxu0
  %v945 = vadd.f32 %v841, %v944
  %v946 = vpop.f32.mrb[0].mxu0
  %947 = vmatprep.mubr.bf16.mxu0 0
  %948 = vmatmul.mubr.bf16.gmra.mrb[0].mxu0 %v807
  %v949 = vpop.f32.mrb[0].mxu0
  %v950 = vadd.f32 %v841, %v949
  %v951 = vpop.f32.mrb[0].mxu0
  %v952 = vpop.f32.mrb[0].mxu0
  %v953 = vadd.f32 %v841, %v952
  %v954 = vpop.f32.mrb[0].mxu0
  %955 = vmatprep.mubr.bf16.mxu0 0
  %956 = vmatmul.mubr.bf16.gmra.mrb[0].mxu0 %v808
  %v957 = vpop.f32.mrb[0].mxu0
  %v958 = vadd.f32 %v841, %v957
  %v959 = vpop.f32.mrb[0].mxu0
  %v960 = vpop.f32.mrb[0].mxu0
  %v961 = vadd.f32 %v841, %v960
  %v962 = vpop.f32.mrb[0].mxu0
  %963 = vmatprep.mubr.bf16.mxu0 0
  %964 = vmatmul.mubr.bf16.gmra.mrb[0].mxu0 %v809
  %v965 = vpop.f32.mrb[0].mxu0
  %v966 = vadd.f32 %v841, %v965
  %v967 = vpop.f32.mrb[0].mxu0
  %v968 = vpop.f32.mrb[0].mxu0
  %v969 = vadd.f32 %v841, %v968
  %v970 = vpop.f32.mrb[0].mxu0
  %971 = vmatprep.mubr.bf16.mxu0 0
  %972 = vmatmul.mubr.bf16.gmra.mrb[0].mxu0 %v810
  %v973 = vpop.f32.mrb[0].mxu0
  %v974 = vadd.f32 %v841, %v973
  %v975 = vpop.f32.mrb[0].mxu0
  %v976 = vpop.f32.mrb[0].mxu0
  %v977 = vadd.f32 %v841, %v976
  %v978 = vpop.f32.mrb[0].mxu0
  %979 = vmatprep.mubr.bf16.mxu0 0
  %980 = vmatmul.mubr.bf16.gmra.mrb[0].mxu0 %v811
  %v981 = vpop.f32.mrb[0].mxu0
  %v982 = vadd.f32 %v841, %v981
  %v983 = vpop.f32.mrb[0].mxu0
  %v984 = vpop.f32.mrb[0].mxu0
  %v985 = vadd.f32 %v841, %v984
  %v986 = vpop.f32.mrb[0].mxu0
  %987 = vmatprep.mubr.bf16.mxu0 0
  %988 = vmatmul.mubr.bf16.gmra.mrb[0].mxu0 %v812
  %v989 = vpop.f32.mrb[0].mxu0
  %v990 = vadd.f32 %v841, %v989
  %v991 = vpop.f32.mrb[0].mxu0
  %v992 = vpop.f32.mrb[0].mxu0
  %v993 = vadd.f32 %v841, %v992
  %v994 = vpop.f32.mrb[0].mxu0
  %995 = vmatprep.mubr.bf16.mxu0 0
  %996 = vmatmul.mubr.bf16.gmra.mrb[0].mxu0 %v813
  %v997 = vpop.f32.mrb[0].mxu0
  %v998 = vadd.f32 %v841, %v997
  %v999 = vpop.f32.mrb[0].mxu0
  %v1000 = vpop.f32.mrb[0].mxu0
  %v1001 = vadd.f32 %v841, %v1000
  %v1002 = vpop.f32.mrb[0].mxu0
  %1003 = vmatprep.mubr.bf16.mxu0 0
  %1004 = vmatmul.mubr.bf16.gmra.mrb[0].mxu0 %v814
  %v1005 = vpop.f32.mrb[0].mxu0
  %v1006 = vadd.f32 %v841, %v1005
  %v1007 = vpop.f32.mrb[0].mxu0
  %v1008 = vpop.f32.mrb[0].mxu0
  %v1009 = vadd.f32 %v841, %v1008
  %v1010 = vpop.f32.mrb[0].mxu0
  %1011 = vmatprep.mubr.bf16.mxu0 0
  %1012 = vmatmul.mubr.bf16.gmra.mrb[0].mxu0 %v815
  %v1013 = vpop.f32.mrb[0].mxu0
  %v1014 = vadd.f32 %v841, %v1013
  %v1015 = vpop.f32.mrb[0].mxu0
  %v1016 = vpop.f32.mrb[0].mxu0
  %v1017 = vadd.f32 %v841, %v1016
  %v1018 = vpop.f32.mrb[0].mxu0
  %1019 = vmatprep.mubr.bf16.mxu0 0
  %1020 = vmatmul.mubr.bf16.gmra.mrb[0].mxu0 %v816
  %v1021 = vpop.f32.mrb[0].mxu0
  %v1022 = vadd.f32 %v841, %v1021
  %v1023 = vpop.f32.mrb[0].mxu0
  %v1024 = vpop.f32.mrb[0].mxu0
  %v1025 = vadd.f32 %v841, %v1024
  %v1026 = vpop.f32.mrb[0].mxu0
  %1027 = vmatprep.mubr.bf16.mxu0 0
  %1028 = vmatmul.mubr.bf16.gmra.mrb[0].mxu0 %v817
  %v1029 = vpop.f32.mrb[0].mxu0
  %v1030 = vadd.f32 %v841, %v1029
  %v1031 = vpop.f32.mrb[0].mxu0
  %v1032 = vpop.f32.mrb[0].mxu0
  %v1033 = vadd.f32 %v841, %v1032
  %v1034 = vpop.f32.mrb[0].mxu0
  %1035 = vmatprep.mubr.bf16.mxu0 0
  %1036 = vmatmul.mubr.bf16.gmra.mrb[0].mxu0 %v818
  %v1037 = vpop.f32.mrb[0].mxu0
  %v1038 = vadd.f32 %v841, %v1037
  %v1039 = vpop.f32.mrb[0].mxu0
  %v1040 = vpop.f32.mrb[0].mxu0
  %v1041 = vadd.f32 %v841, %v1040
  %v1042 = vpop.f32.mrb[0].mxu0
  %1043 = vmatprep.mubr.bf16.mxu0 0
  %1044 = vmatmul.mubr.bf16.gmra.mrb[0].mxu0 %v819
  %v1045 = vpop.f32.mrb[0].mxu0
  %v1046 = vadd.f32 %v841, %v1045
  %v1047 = vpop.f32.mrb[0].mxu0
  %v1048 = vpop.f32.mrb[0].mxu0
  %v1049 = vadd.f32 %v841, %v1048
  %v1050 = vpop.f32.mrb[0].mxu0
  %1051 = vdwg.mxu0
  %1052 = vmax.xlane.f32.xlu0 %v926
  %v1053 = vpop.xlane.xlu0 %1052
  %1054 = vmax.xlane.f32.xlu0 %v929
  %v1055 = vpop.xlane.xlu0 %1054
  %1056 = vmax.xlane.f32.xlu0 %v934
  %v1057 = vpop.xlane.xlu0 %1056
  %1058 = vmax.xlane.f32.xlu0 %v937
  %v1059 = vpop.xlane.xlu0 %1058
  %1060 = vmax.xlane.f32.xlu0 %v942
  %v1061 = vpop.xlane.xlu0 %1060
  %1062 = vmax.xlane.f32.xlu0 %v945
  %v1063 = vpop.xlane.xlu0 %1062
  %1064 = vmax.xlane.f32.xlu0 %v950
  %v1065 = vpop.xlane.xlu0 %1064
  %1066 = vmax.xlane.f32.xlu0 %v953
  %v1067 = vpop.xlane.xlu0 %1066
  %1068 = vmax.xlane.f32.xlu0 %v958
  %v1069 = vpop.xlane.xlu0 %1068
  %1070 = vmax.xlane.f32.xlu0 %v961
  %v1071 = vpop.xlane.xlu0 %1070
  %1072 = vmax.xlane.f32.xlu0 %v966
  %v1073 = vpop.xlane.xlu0 %1072
  %1074 = vmax.xlane.f32.xlu0 %v969
  %v1075 = vpop.xlane.xlu0 %1074
  %1076 = vmax.xlane.f32.xlu0 %v974
  %v1077 = vpop.xlane.xlu0 %1076
  %1078 = vmax.xlane.f32.xlu0 %v977
  %v1079 = vpop.xlane.xlu0 %1078
  %1080 = vmax.xlane.f32.xlu0 %v982
  %v1081 = vpop.xlane.xlu0 %1080
  %1082 = vmax.xlane.f32.xlu0 %v985
  %v1083 = vpop.xlane.xlu0 %1082
  %1084 = vmax.xlane.f32.xlu0 %v990
  %v1085 = vpop.xlane.xlu0 %1084
  %1086 = vmax.xlane.f32.xlu0 %v993
  %v1087 = vpop.xlane.xlu0 %1086
  %1088 = vmax.xlane.f32.xlu0 %v998
  %v1089 = vpop.xlane.xlu0 %1088
  %1090 = vmax.xlane.f32.xlu0 %v1001
  %v1091 = vpop.xlane.xlu0 %1090
  %1092 = vmax.xlane.f32.xlu0 %v1006
  %v1093 = vpop.xlane.xlu0 %1092
  %1094 = vmax.xlane.f32.xlu0 %v1009
  %v1095 = vpop.xlane.xlu0 %1094
  %1096 = vmax.xlane.f32.xlu0 %v1014
  %v1097 = vpop.xlane.xlu0 %1096
  %1098 = vmax.xlane.f32.xlu0 %v1017
  %v1099 = vpop.xlane.xlu0 %1098
  %1100 = vmax.xlane.f32.xlu0 %v1022
  %v1101 = vpop.xlane.xlu0 %1100
  %1102 = vmax.xlane.f32.xlu0 %v1025
  %v1103 = vpop.xlane.xlu0 %1102
  %1104 = vmax.xlane.f32.xlu0 %v1030
  %v1105 = vpop.xlane.xlu0 %1104
  %1106 = vmax.xlane.f32.xlu0 %v1033
  %v1107 = vpop.xlane.xlu0 %1106
  %1108 = vmax.xlane.f32.xlu0 %v1038
  %v1109 = vpop.xlane.xlu0 %1108
  %1110 = vmax.xlane.f32.xlu0 %v1041
  %v1111 = vpop.xlane.xlu0 %1110
  %1112 = vmax.xlane.f32.xlu0 %v1046
  %v1113 = vpop.xlane.xlu0 %1112
  %1114 = vmax.xlane.f32.xlu0 %v1049
  %v1115 = vpop.xlane.xlu0 %1114
  %v1116 = vsub.f32 %v926, %v1053
  %v1117 = vsub.f32 %v929, %v1055
  %v1118 = vsub.f32 %v934, %v1057
  %v1119 = vsub.f32 %v937, %v1059
  %v1120 = vsub.f32 %v942, %v1061
  %v1121 = vsub.f32 %v945, %v1063
  %v1122 = vsub.f32 %v950, %v1065
  %v1123 = vsub.f32 %v953, %v1067
  %v1124 = vsub.f32 %v958, %v1069
  %v1125 = vsub.f32 %v961, %v1071
  %v1126 = vsub.f32 %v966, %v1073
  %v1127 = vsub.f32 %v969, %v1075
  %v1128 = vsub.f32 %v974, %v1077
  %v1129 = vsub.f32 %v977, %v1079
  %v1130 = vsub.f32 %v982, %v1081
  %v1131 = vsub.f32 %v985, %v1083
  %v1132 = vsub.f32 %v990, %v1085
  %v1133 = vsub.f32 %v993, %v1087
  %v1134 = vsub.f32 %v998, %v1089
  %v1135 = vsub.f32 %v1001, %v1091
  %v1136 = vsub.f32 %v1006, %v1093
  %v1137 = vsub.f32 %v1009, %v1095
  %v1138 = vsub.f32 %v1014, %v1097
  %v1139 = vsub.f32 %v1017, %v1099
  %v1140 = vsub.f32 %v1022, %v1101
  %v1141 = vsub.f32 %v1025, %v1103
  %v1142 = vsub.f32 %v1030, %v1105
  %v1143 = vsub.f32 %v1033, %v1107
  %v1144 = vsub.f32 %v1038, %v1109
  %v1145 = vsub.f32 %v1041, %v1111
  %v1146 = vsub.f32 %v1046, %v1113
  %v1147 = vsub.f32 %v1049, %v1115
  %v1148 = vmul.f32 %v1116, 1.442695
  %v1149 = vpow.pop %v1148
  %v1150 = vmul.f32 %v1117, 1.442695
  %v1151 = vpow.pop %v1150
  %v1152 = vmul.f32 %v1118, 1.442695
  %v1153 = vpow.pop %v1152
  %v1154 = vmul.f32 %v1119, 1.442695
  %v1155 = vpow.pop %v1154
  %v1156 = vmul.f32 %v1120, 1.442695
  %v1157 = vpow.pop %v1156
  %v1158 = vmul.f32 %v1121, 1.442695
  %v1159 = vpow.pop %v1158
  %v1160 = vmul.f32 %v1122, 1.442695
  %v1161 = vpow.pop %v1160
  %v1162 = vmul.f32 %v1123, 1.442695
  %v1163 = vpow.pop %v1162
  %v1164 = vmul.f32 %v1124, 1.442695
  %v1165 = vpow.pop %v1164
  %v1166 = vmul.f32 %v1125, 1.442695
  %v1167 = vpow.pop %v1166
  %v1168 = vmul.f32 %v1126, 1.442695
  %v1169 = vpow.pop %v1168
  %v1170 = vmul.f32 %v1127, 1.442695
  %v1171 = vpow.pop %v1170
  %v1172 = vmul.f32 %v1128, 1.442695
  %v1173 = vpow.pop %v1172
  %v1174 = vmul.f32 %v1129, 1.442695
  %v1175 = vpow.pop %v1174
  %v1176 = vmul.f32 %v1130, 1.442695
  %v1177 = vpow.pop %v1176
  %v1178 = vmul.f32 %v1131, 1.442695
  %v1179 = vpow.pop %v1178
  %v1180 = vmul.f32 %v1132, 1.442695
  %v1181 = vpow.pop %v1180
  %v1182 = vmul.f32 %v1133, 1.442695
  %v1183 = vpow.pop %v1182
  %v1184 = vmul.f32 %v1134, 1.442695
  %v1185 = vpow.pop %v1184
  %v1186 = vmul.f32 %v1135, 1.442695
  %v1187 = vpow.pop %v1186
  %v1188 = vmul.f32 %v1136, 1.442695
  %v1189 = vpow.pop %v1188
  %v1190 = vmul.f32 %v1137, 1.442695
  %v1191 = vpow.pop %v1190
  %v1192 = vmul.f32 %v1138, 1.442695
  %v1193 = vpow.pop %v1192
  %v1194 = vmul.f32 %v1139, 1.442695
  %v1195 = vpow.pop %v1194
  %v1196 = vmul.f32 %v1140, 1.442695
  %v1197 = vpow.pop %v1196
  %v1198 = vmul.f32 %v1141, 1.442695
  %v1199 = vpow.pop %v1198
  %v1200 = vmul.f32 %v1142, 1.442695
  %v1201 = vpow.pop %v1200
  %v1202 = vmul.f32 %v1143, 1.442695
  %v1203 = vpow.pop %v1202
  %v1204 = vmul.f32 %v1144, 1.442695
  %v1205 = vpow.pop %v1204
  %v1206 = vmul.f32 %v1145, 1.442695
  %v1207 = vpow.pop %v1206
  %v1208 = vmul.f32 %v1146, 1.442695
  %v1209 = vpow.pop %v1208
  %v1210 = vmul.f32 %v1147, 1.442695
  %v1211 = vpow.pop %v1210
  %1212 = vadd.xlane.f32.xlu0 %v1149
  %v1213 = vpop.xlane.xlu0 %1212
  %1214 = vadd.xlane.f32.xlu0 %v1151
  %v1215 = vpop.xlane.xlu0 %1214
  %1216 = vadd.xlane.f32.xlu0 %v1153
  %v1217 = vpop.xlane.xlu0 %1216
  %1218 = vadd.xlane.f32.xlu0 %v1155
  %v1219 = vpop.xlane.xlu0 %1218
  %1220 = vadd.xlane.f32.xlu0 %v1157
  %v1221 = vpop.xlane.xlu0 %1220
  %1222 = vadd.xlane.f32.xlu0 %v1159
  %v1223 = vpop.xlane.xlu0 %1222
  %1224 = vadd.xlane.f32.xlu0 %v1161
  %v1225 = vpop.xlane.xlu0 %1224
  %1226 = vadd.xlane.f32.xlu0 %v1163
  %v1227 = vpop.xlane.xlu0 %1226
  %1228 = vadd.xlane.f32.xlu0 %v1165
  %v1229 = vpop.xlane.xlu0 %1228
  %1230 = vadd.xlane.f32.xlu0 %v1167
  %v1231 = vpop.xlane.xlu0 %1230
  %1232 = vadd.xlane.f32.xlu0 %v1169
  %v1233 = vpop.xlane.xlu0 %1232
  %1234 = vadd.xlane.f32.xlu0 %v1171
  %v1235 = vpop.xlane.xlu0 %1234
  %1236 = vadd.xlane.f32.xlu0 %v1173
  %v1237 = vpop.xlane.xlu0 %1236
  %1238 = vadd.xlane.f32.xlu0 %v1175
  %v1239 = vpop.xlane.xlu0 %1238
  %1240 = vadd.xlane.f32.xlu0 %v1177
  %v1241 = vpop.xlane.xlu0 %1240
  %1242 = vadd.xlane.f32.xlu0 %v1179
  %v1243 = vpop.xlane.xlu0 %1242
  %1244 = vadd.xlane.f32.xlu0 %v1181
  %v1245 = vpop.xlane.xlu0 %1244
  %1246 = vadd.xlane.f32.xlu0 %v1183
  %v1247 = vpop.xlane.xlu0 %1246
  %1248 = vadd.xlane.f32.xlu0 %v1185
  %v1249 = vpop.xlane.xlu0 %1248
  %1250 = vadd.xlane.f32.xlu0 %v1187
  %v1251 = vpop.xlane.xlu0 %1250
  %1252 = vadd.xlane.f32.xlu0 %v1189
  %v1253 = vpop.xlane.xlu0 %1252
  %1254 = vadd.xlane.f32.xlu0 %v1191
  %v1255 = vpop.xlane.xlu0 %1254
  %1256 = vadd.xlane.f32.xlu0 %v1193
  %v1257 = vpop.xlane.xlu0 %1256
  %1258 = vadd.xlane.f32.xlu0 %v1195
  %v1259 = vpop.xlane.xlu0 %1258
  %1260 = vadd.xlane.f32.xlu0 %v1197
  %v1261 = vpop.xlane.xlu0 %1260
  %1262 = vadd.xlane.f32.xlu0 %v1199
  %v1263 = vpop.xlane.xlu0 %1262
  %1264 = vadd.xlane.f32.xlu0 %v1201
  %v1265 = vpop.xlane.xlu0 %1264
  %1266 = vadd.xlane.f32.xlu0 %v1203
  %v1267 = vpop.xlane.xlu0 %1266
  %1268 = vadd.xlane.f32.xlu0 %v1205
  %v1269 = vpop.xlane.xlu0 %1268
  %1270 = vadd.xlane.f32.xlu0 %v1207
  %v1271 = vpop.xlane.xlu0 %1270
  %1272 = vadd.xlane.f32.xlu0 %v1209
  %v1273 = vpop.xlane.xlu0 %1272
  %1274 = vadd.xlane.f32.xlu0 %v1211
  %v1275 = vpop.xlane.xlu0 %1274
  %v1276 = vrcp.pop %v1213
  %v1277 = vmul.f32 1.0, %v1276
  %v1278 = vrcp.pop %v1215
  %v1279 = vmul.f32 1.0, %v1278
  %v1280 = vrcp.pop %v1217
  %v1281 = vmul.f32 1.0, %v1280
  %v1282 = vrcp.pop %v1219
  %v1283 = vmul.f32 1.0, %v1282
  %v1284 = vrcp.pop %v1221
  %v1285 = vmul.f32 1.0, %v1284
  %v1286 = vrcp.pop %v1223
  %v1287 = vmul.f32 1.0, %v1286
  %v1288 = vrcp.pop %v1225
  %v1289 = vmul.f32 1.0, %v1288
  %v1290 = vrcp.pop %v1227
  %v1291 = vmul.f32 1.0, %v1290
  %v1292 = vrcp.pop %v1229
  %v1293 = vmul.f32 1.0, %v1292
  %v1294 = vrcp.pop %v1231
  %v1295 = vmul.f32 1.0, %v1294
  %v1296 = vrcp.pop %v1233
  %v1297 = vmul.f32 1.0, %v1296
  %v1298 = vrcp.pop %v1235
  %v1299 = vmul.f32 1.0, %v1298
  %v1300 = vrcp.pop %v1237
  %v1301 = vmul.f32 1.0, %v1300
  %v1302 = vrcp.pop %v1239
  %v1303 = vmul.f32 1.0, %v1302
  %v1304 = vrcp.pop %v1241
  %v1305 = vmul.f32 1.0, %v1304
  %v1306 = vrcp.pop %v1243
  %v1307 = vmul.f32 1.0, %v1306
  %v1308 = vrcp.pop %v1245
  %v1309 = vmul.f32 1.0, %v1308
  %v1310 = vrcp.pop %v1247
  %v1311 = vmul.f32 1.0, %v1310
  %v1312 = vrcp.pop %v1249
  %v1313 = vmul.f32 1.0, %v1312
  %v1314 = vrcp.pop %v1251
  %v1315 = vmul.f32 1.0, %v1314
  %v1316 = vrcp.pop %v1253
  %v1317 = vmul.f32 1.0, %v1316
  %v1318 = vrcp.pop %v1255
  %v1319 = vmul.f32 1.0, %v1318
  %v1320 = vrcp.pop %v1257
  %v1321 = vmul.f32 1.0, %v1320
  %v1322 = vrcp.pop %v1259
  %v1323 = vmul.f32 1.0, %v1322
  %v1324 = vrcp.pop %v1261
  %v1325 = vmul.f32 1.0, %v1324
  %v1326 = vrcp.pop %v1263
  %v1327 = vmul.f32 1.0, %v1326
  %v1328 = vrcp.pop %v1265
  %v1329 = vmul.f32 1.0, %v1328
  %v1330 = vrcp.pop %v1267
  %v1331 = vmul.f32 1.0, %v1330
  %v1332 = vrcp.pop %v1269
  %v1333 = vmul.f32 1.0, %v1332
  %v1334 = vrcp.pop %v1271
  %v1335 = vmul.f32 1.0, %v1334
  %v1336 = vrcp.pop %v1273
  %v1337 = vmul.f32 1.0, %v1336
  %v1338 = vrcp.pop %v1275
  %v1339 = vmul.f32 1.0, %v1338
  %v1340 = vmul.f32 %v1149, %v1277
  %v1341 = vmul.f32 %v1151, %v1279
  %v1342 = vmul.f32 %v1153, %v1281
  %v1343 = vmul.f32 %v1155, %v1283
  %v1344 = vmul.f32 %v1157, %v1285
  %v1345 = vmul.f32 %v1159, %v1287
  %v1346 = vmul.f32 %v1161, %v1289
  %v1347 = vmul.f32 %v1163, %v1291
  %v1348 = vmul.f32 %v1165, %v1293
  %v1349 = vmul.f32 %v1167, %v1295
  %v1350 = vmul.f32 %v1169, %v1297
  %v1351 = vmul.f32 %v1171, %v1299
  %v1352 = vmul.f32 %v1173, %v1301
  %v1353 = vmul.f32 %v1175, %v1303
  %v1354 = vmul.f32 %v1177, %v1305
  %v1355 = vmul.f32 %v1179, %v1307
  %v1356 = vmul.f32 %v1181, %v1309
  %v1357 = vmul.f32 %v1183, %v1311
  %v1358 = vmul.f32 %v1185, %v1313
  %v1359 = vmul.f32 %v1187, %v1315
  %v1360 = vmul.f32 %v1189, %v1317
  %v1361 = vmul.f32 %v1191, %v1319
  %v1362 = vmul.f32 %v1193, %v1321
  %v1363 = vmul.f32 %v1195, %v1323
  %v1364 = vmul.f32 %v1197, %v1325
  %v1365 = vmul.f32 %v1199, %v1327
  %v1366 = vmul.f32 %v1201, %v1329
  %v1367 = vmul.f32 %v1203, %v1331
  %v1368 = vmul.f32 %v1205, %v1333
  %v1369 = vmul.f32 %v1207, %v1335
  %v1370 = vmul.f32 %v1209, %v1337
  %v1371 = vmul.f32 %v1211, %v1339
  %vm1372 = vcmask 23552
  %1373 = vst.msk [vmem:[%s7] sm:$0xff] %vm1372, %v1340
  %1374 = vst.msk [vmem:[%s7 + $0x8] sm:$0xff] %vm1372, %v1341
  %1375 = vst.msk [vmem:[%s7 + $0x10] sm:$0xff] %vm1372, %v1342
  %1376 = vst.msk [vmem:[%s7 + $0x18] sm:$0xff] %vm1372, %v1343
  %1377 = vst.msk [vmem:[%s7 + $0x20] sm:$0xff] %vm1372, %v1344
  %1378 = vst.msk [vmem:[%s7 + $0x28] sm:$0xff] %vm1372, %v1345
  %1379 = vst.msk [vmem:[%s7 + $0x30] sm:$0xff] %vm1372, %v1346
  %1380 = vst.msk [vmem:[%s7 + $0x38] sm:$0xff] %vm1372, %v1347
  %1381 = vst.msk [vmem:[%s7 + $0x40] sm:$0xff] %vm1372, %v1348
  %1382 = vst.msk [vmem:[%s7 + $0x48] sm:$0xff] %vm1372, %v1349
  %1383 = vst.msk [vmem:[%s7 + $0x50] sm:$0xff] %vm1372, %v1350
  %1384 = vst.msk [vmem:[%s7 + $0x58] sm:$0xff] %vm1372, %v1351
  %1385 = vst.msk [vmem:[%s7 + $0x60] sm:$0xff] %vm1372, %v1352
  %1386 = vst.msk [vmem:[%s7 + $0x68] sm:$0xff] %vm1372, %v1353
  %1387 = vst.msk [vmem:[%s7 + $0x70] sm:$0xff] %vm1372, %v1354
  %1388 = vst.msk [vmem:[%s7 + $0x78] sm:$0xff] %vm1372, %v1355
  %1389 = vst.msk [vmem:[%s7 + $0x80] sm:$0xff] %vm1372, %v1356
  %1390 = vst.msk [vmem:[%s7 + $0x88] sm:$0xff] %vm1372, %v1357
  %1391 = vst.msk [vmem:[%s7 + $0x90] sm:$0xff] %vm1372, %v1358
  %1392 = vst.msk [vmem:[%s7 + $0x98] sm:$0xff] %vm1372, %v1359
  %1393 = vst.msk [vmem:[%s7 + $0xa0] sm:$0xff] %vm1372, %v1360
  %1394 = vst.msk [vmem:[%s7 + $0xa8] sm:$0xff] %vm1372, %v1361
  %1395 = vst.msk [vmem:[%s7 + $0xb0] sm:$0xff] %vm1372, %v1362
  %1396 = vst.msk [vmem:[%s7 + $0xb8] sm:$0xff] %vm1372, %v1363
  %1397 = vst.msk [vmem:[%s7 + $0xc0] sm:$0xff] %vm1372, %v1364
  %1398 = vst.msk [vmem:[%s7 + $0xc8] sm:$0xff] %vm1372, %v1365
  %1399 = vst.msk [vmem:[%s7 + $0xd0] sm:$0xff] %vm1372, %v1366
  %1400 = vst.msk [vmem:[%s7 + $0xd8] sm:$0xff] %vm1372, %v1367
  %1401 = vst.msk [vmem:[%s7 + $0xe0] sm:$0xff] %vm1372, %v1368
  %1402 = vst.msk [vmem:[%s7 + $0xe8] sm:$0xff] %vm1372, %v1369
  %1403 = vst.msk [vmem:[%s7 + $0xf0] sm:$0xff] %vm1372, %v1370
  %1404 = vst.msk [vmem:[%s7 + $0xf8] sm:$0xff] %vm1372, %v1371
  // Predicated region
  $region30: #{_policy_forward_tb.1} parent=0 // pred_check
    _
  $region31: #{_policy_forward_tb.1} parent=0 // pred_check_branch
    %1406 = sbr.rel (0) target = $region33
  $region32: #{_policy_forward_tb.1} parent=0 // pred_region
    _
  $region33: #{_policy_forward_tb.1} parent=0 // pred_fallthru
    _
  // Predicated region
  $region34: #{_policy_forward_tb.1} parent=0 // pred_check
    _
  $region35: #{_policy_forward_tb.1} parent=0 // pred_check_branch
    %1408 = sbr.rel (0) target = $region37
  $region36: #{_policy_forward_tb.1} parent=0 // pred_region
    _
  $region37: #{_policy_forward_tb.1} parent=0 // pred_fallthru
    _

</llo_original>
